<compile_context>
chip_gen: v6e
topology: v6e:2x2x1
jax: 0.10.0
libtpu: 0.0.40
codegen_flags: <defaults>
</compile_context>

<pallas_src>
import functools

import jax
import jax.numpy as jnp
from jax.experimental import pallas as pl
from jax.experimental.pallas import tpu as pltpu

LANE = 128
SUB = 8                    # f32 sublanes per vreg
TARGET_TILE_ROWS = 2048    # 2048 x 128 x 4B = 1 MiB per f32 input block


def _charbonnier_kernel(x_ref, y_ref, out_ref, acc_ref, *, eps, n_total,
                        pad_count, tile_rows, last_valid_rows):
    i = pl.program_id(0)
    last = pl.num_programs(0) - 1

    @pl.when(i == 0)
    def _():
        acc_ref[...] = jnp.zeros_like(acc_ref)

    # Cast after load (inputs stream in native dtype, e.g. bf16 -> half the
    # HBM bytes).  eps*eps is a trace-time Python constant.
    d = x_ref[...].astype(jnp.float32) - y_ref[...].astype(jnp.float32)
    val = jnp.sqrt(d * d + jnp.float32(eps * eps))

    if last_valid_rows == tile_rows:
        # Every block is full: unmasked vector accumulation (pure VPU adds,
        # ~1 vadd per vreg loaded -> deeply under the HBM-DMA bound).
        acc_ref[...] += val.reshape(-1, SUB, LANE).sum(axis=0)
    else:
        @pl.when(i != last)
        def _():
            acc_ref[...] += val.reshape(-1, SUB, LANE).sum(axis=0)

        @pl.when(i == last)
        def _():
            # Ragged last block: mask out Pallas out-of-bounds (garbage) rows.
            row = jax.lax.broadcasted_iota(jnp.int32, val.shape, 0)
            masked = jnp.where(row < last_valid_rows, val, jnp.float32(0.0))
            acc_ref[...] += masked.reshape(-1, SUB, LANE).sum(axis=0)

    @pl.when(i == last)
    def _():
        # Each zero-padded tail element contributed exactly sqrt(eps^2) = eps.
        total = jnp.sum(acc_ref[...]) - jnp.float32(pad_count) * jnp.float32(eps)
        out_ref[0, 0] = total / jnp.float32(n_total)


def charbonnier_loss(x, y, eps=1e-3):
    assert x.shape == y.shape
    n_total = x.size

    xf = x.reshape(-1)
    yf = y.reshape(-1)

    # Pad only to a multiple of (8, 128) = 1024 elements so the flat layout is
    # sublane/lane aligned (<= 1023 zeros; a no-op for typical NCHW tensors).
    # TODO(synk): for unaligned sizes jnp.pad materializes a copy of the full
    # array; a copy-free ragged-tail path would need a 1-D/manual-DMA kernel.
    pad = (-n_total) % (SUB * LANE)
    if pad:
        xf = jnp.pad(xf, (0, pad))
        yf = jnp.pad(yf, (0, pad))

    rows = xf.size // LANE                        # multiple of 8
    tile_rows = min(TARGET_TILE_ROWS, rows)       # multiple of 8
    grid = pl.cdiv(rows, tile_rows)
    last_valid_rows = rows - (grid - 1) * tile_rows

    x2d = xf.reshape(rows, LANE)
    y2d = yf.reshape(rows, LANE)

    kernel = functools.partial(
        _charbonnier_kernel,
        eps=float(eps),
        n_total=int(n_total),
        pad_count=int(pad),
        tile_rows=int(tile_rows),
        last_valid_rows=int(last_valid_rows),
    )

    # TODO(synk): on v7x a leading "parallel" grid axis (one partial-sum slot
    # per TensorCore) could shard the row range across the 2 TCs; kept as a
    # single sequential accumulation axis since a lone TC already saturates
    # HBM bandwidth for this mem-bound reduction.
    out = pl.pallas_call(
        kernel,
        out_shape=jax.ShapeDtypeStruct((1, 1), jnp.float32),
        grid_spec=pltpu.PrefetchScalarGridSpec(
            num_scalar_prefetch=0,
            grid=(grid,),
            in_specs=[
                pl.BlockSpec((tile_rows, LANE), lambda i: (i, 0)),
                pl.BlockSpec((tile_rows, LANE), lambda i: (i, 0)),
            ],
            out_specs=pl.BlockSpec(memory_space=pltpu.SMEM),
            scratch_shapes=[pltpu.VMEM((SUB, LANE), jnp.float32)],
        ),
        compiler_params=pltpu.CompilerParams(
            dimension_semantics=("arbitrary",),  # sequential accumulation axis
        ),
    )(x2d, y2d)
    return out[0, 0]


def charbonnier_loss_ref(x, y, eps=1e-3):
    diff = x.astype(jnp.float32) - y.astype(jnp.float32)
    return jnp.mean(jnp.sqrt(diff * diff + eps * eps))


if __name__ == "__main__":
    key = jax.random.PRNGKey(0)
    kx, ky = jax.random.split(key)
    # NCHW, like the PyTorch module's typical usage.
    x = jax.random.normal(kx, (2, 4, 16, 16), dtype=jnp.float32)
    y = jax.random.normal(ky, (2, 4, 16, 16), dtype=jnp.float32)

    loss = jax.block_until_ready(charbonnier_loss(x, y))
    ref = jax.block_until_ready(charbonnier_loss_ref(x, y))

    assert jnp.allclose(loss, ref, rtol=1e-5, atol=1e-6), (loss, ref)
    print("KERNEL_OK")
</pallas_src>

<mosaic_0001>
module attributes {stable_mosaic.version = 11 : i64} {
  func.func @_charbonnier_kernel(%arg0: i32, %arg1: memref<16x128xf32, #tpu.memory_space<vmem>>, %arg2: memref<16x128xf32, #tpu.memory_space<vmem>>, %arg3: memref<1x1xf32, #tpu.memory_space<smem>>, %arg4: memref<8x128xf32, #tpu.memory_space<vmem>>) attributes {dimension_semantics = [#tpu.dimension_semantics<arbitrary>], iteration_bounds = array<i64: 1>, scalar_prefetch = 0 : i64, scratch_operands = 1 : i64, tpu.core_type = #tpu.core_type<tc>, window_params = [{transform_indices = @transform_0, window_bounds = array<i64: 16, 128>}, {transform_indices = @transform_1, window_bounds = array<i64: 16, 128>}, {transform_indices = @transform_2, window_bounds = array<i64: 1, 1>}]} {
    %c0_i32 = arith.constant 0 : i32
    %0 = arith.cmpi eq, %arg0, %c0_i32 : i32
    %1 = arith.extui %0 : i1 to i32
    %c0_i32_0 = arith.constant 0 : i32
    %2 = arith.cmpi ne, %1, %c0_i32_0 : i32
    scf.if %2 {
      %cst_11 = arith.constant 0.000000e+00 : f32
      %18 = vector.broadcast %cst_11 : f32 to vector<8x128xf32>
      %c0_12 = arith.constant 0 : index
      %c0_13 = arith.constant 0 : index
      %19 = vector.load %arg4[%c0_12, %c0_13] : memref<8x128xf32, #tpu.memory_space<vmem>>, vector<8x128xf32>
      tpu.vector_store %arg4[%c0_12, %c0_13], %18 {strides = array<i32>} : memref<8x128xf32, #tpu.memory_space<vmem>>, vector<8x128xf32>,
    } else {
    }
    %c0 = arith.constant 0 : index
    %c0_1 = arith.constant 0 : index
    %3 = vector.load %arg1[%c0, %c0_1] : memref<16x128xf32, #tpu.memory_space<vmem>>, vector<16x128xf32>
    %c0_2 = arith.constant 0 : index
    %c0_3 = arith.constant 0 : index
    %4 = vector.load %arg2[%c0_2, %c0_3] : memref<16x128xf32, #tpu.memory_space<vmem>>, vector<16x128xf32>
    %5 = arith.subf %3, %4 : vector<16x128xf32>
    %6 = arith.mulf %5, %5 : vector<16x128xf32>
    %cst = arith.constant 9.99999997E-7 : f32
    %7 = vector.broadcast %cst : f32 to vector<16x128xf32>
    %8 = arith.addf %6, %7 : vector<16x128xf32>
    %9 = math.sqrt %8 : vector<16x128xf32>
    %c0_4 = arith.constant 0 : index
    %c0_5 = arith.constant 0 : index
    %10 = vector.load %arg4[%c0_4, %c0_5] : memref<8x128xf32, #tpu.memory_space<vmem>>, vector<8x128xf32>
    %11 = vector.shape_cast %9 : vector<16x128xf32> to vector<2x8x128xf32>
    %cst_6 = arith.constant dense<0.000000e+00> : vector<8x128xf32>
    %12 = vector.multi_reduction <add>, %11, %cst_6 [0] : vector<2x8x128xf32> to vector<8x128xf32>
    %13 = arith.addf %10, %12 : vector<8x128xf32>
    %c0_7 = arith.constant 0 : index
    %c0_8 = arith.constant 0 : index
    %14 = vector.load %arg4[%c0_7, %c0_8] : memref<8x128xf32, #tpu.memory_space<vmem>>, vector<8x128xf32>
    tpu.vector_store %arg4[%c0_7, %c0_8], %13 {strides = array<i32>} : memref<8x128xf32, #tpu.memory_space<vmem>>, vector<8x128xf32>,
    %c0_i32_9 = arith.constant 0 : i32
    %15 = arith.cmpi eq, %arg0, %c0_i32_9 : i32
    %16 = arith.extui %15 : i1 to i32
    %c0_i32_10 = arith.constant 0 : i32
    %17 = arith.cmpi ne, %16, %c0_i32_10 : i32
    scf.if %17 {
      %c0_11 = arith.constant 0 : index
      %c0_12 = arith.constant 0 : index
      %18 = vector.load %arg4[%c0_11, %c0_12] : memref<8x128xf32, #tpu.memory_space<vmem>>, vector<8x128xf32>
      %19 = vector.shape_cast %18 : vector<8x128xf32> to vector<1x8x128xf32>
      %cst_13 = arith.constant dense<0.000000e+00> : vector<1xf32>
      %20 = vector.multi_reduction <add>, %19, %cst_13 [1, 2] : vector<1x8x128xf32> to vector<1xf32>
      %21 = vector.shape_cast %20 : vector<1xf32> to vector<1x1x1xf32>
      %22 = vector.extract %21[0, 0, 0] : f32 from vector<1x1x1xf32>
      %cst_14 = arith.constant 0.000000e+00 : f32
      %cst_15 = arith.constant 1.000000e-03 : f32
      %23 = arith.mulf %cst_14, %cst_15 : f32
      %24 = arith.subf %22, %23 : f32
      %cst_16 = arith.constant 2.048000e+03 : f32
      %25 = arith.divf %24, %cst_16 : f32
      %c0_17 = arith.constant 0 : index
      %c0_18 = arith.constant 0 : index
      %26 = memref.load %arg3[%c0_17, %c0_18] : memref<1x1xf32, #tpu.memory_space<smem>>
      memref.store %25, %arg3[%c0_17, %c0_18] : memref<1x1xf32, #tpu.memory_space<smem>>
    } else {
    }
    return
  }
  func.func @transform_0(%arg0: i32) -> (i32, i32) {
    %c0_i32 = arith.constant 0 : i32
    %c0_i32_0 = arith.constant 0 : i32
    return %arg0, %c0_i32 : i32, i32
  }
  func.func @transform_1(%arg0: i32) -> (i32, i32) {
    %c0_i32 = arith.constant 0 : i32
    %c0_i32_0 = arith.constant 0 : i32
    return %arg0, %c0_i32 : i32, i32
  }
  func.func @transform_2(%arg0: i32) -> (i32, i32) {
    %c0_i32 = arith.constant 0 : i32
    %c0_i32_0 = arith.constant 0 : i32
    %c0_i32_1 = arith.constant 0 : i32
    return %c0_i32, %c0_i32_0 : i32, i32
  }
}

</mosaic_0001>

<llo_original>
// kernel: tpu_custom_call.1
$region0: #{tpu_custom_call.1}
  #allocation0 [shape = 'u32[]', space=smem, size = 0x4, offset = 0x4, fixed_abs, tag = 'smem constant byte address 0x4 - core index']
  #allocation1 [shape = 'u32[144,128]{1,0:T(1,128)}', space=vmem, size = 0x12000, scoped, tag = 'internal scratch']
  #allocation2 [shape = 'f32[8,128]{1,0:T(8,128)}', space=vmem, size = 0x1000, scoped, tag = 'scratch operand']
  %s0 = inlined_call_operand.hbm [shape: f32[16,128], index: 0, kind: input, shape index: {}]
  %s1 = inlined_call_operand.hbm [shape: f32[16,128], index: 1, kind: input, shape index: {}]
  %s2 = inlined_call_operand.hbm [shape: f32[1,1], index: 2, kind: output, shape index: {}]
  %s3 = sld [smem:[#allocation0]]
  $region34: #{tpu_custom_call.1} parent=0
    _
  %s5 = ssub.s32 1, %s3
  %s6 = scalar_select 0, %s5, %s3
  $region1: #{tpu_custom_call.1} parent=0
    #allocation3 [shape = 'u8[8192]{0}', space=vmem, size = 0x2000, scoped, tag = 'input window, operand 0, single buffered']
    #allocation4 [shape = 's32[1]{0}', space=sflag, size = 0x4, scoped, tag = 'scoped memory for tpu_custom_call.1']
    #allocation5 [shape = 's32[1]{0}', space=sflag, size = 0x4, scoped, tag = 'scoped memory for tpu_custom_call.1']
    #allocation6 [shape = 'u8[8192]{0}', space=vmem, size = 0x2000, scoped, tag = 'input window, operand 1, single buffered']
    #allocation7 [shape = 's32[1]{0}', space=sflag, size = 0x4, scoped, tag = 'scoped memory for tpu_custom_call.1']
    #allocation8 [shape = 'u8[512]{0}', space=smem, size = 0x200, scoped, tag = 'output window, operand 0, single buffered']
    %7 = vsyncpa [#allocation4], 0
    %8 = vsyncpa [#allocation7], 0
    %9 = vsyncpa [#allocation5], 0
    // Predicated region
    $region2: #{tpu_custom_call.1} parent=1 // pred_check
      _
    $region3: #{tpu_custom_call.1} parent=1 // pred_check_branch
      %11 = sbr.rel (0) target = $region5
    $region4: #{tpu_custom_call.1} parent=1 // pred_region
      %s13 = ssub.s32 256, 256
      %14 = vsyncadd [#allocation4], %s13
      %s15 = sshll.u32 [#allocation3], 4
      %s16 = int_to_ptr.vmem [resolvable:$true] %s15
      %21 = dma.hbm_to_vmem [thread:$0]  %s0, 256, %s16, [#allocation4], 128, 128, 8
    $region5: #{tpu_custom_call.1} parent=1 // pred_fallthru
      _
    // Predicated region
    $region6: #{tpu_custom_call.1} parent=1 // pred_check
      _
    $region7: #{tpu_custom_call.1} parent=1 // pred_check_branch
      %23 = sbr.rel (0) target = $region9
    $region8: #{tpu_custom_call.1} parent=1 // pred_region
      %s25 = ssub.s32 256, 256
      %26 = vsyncadd [#allocation7], %s25
      %s27 = sshll.u32 [#allocation6], 4
      %s28 = int_to_ptr.vmem [resolvable:$true] %s27
      %33 = dma.hbm_to_vmem [thread:$0]  %s1, 256, %s28, [#allocation7], 128, 128, 8
    $region9: #{tpu_custom_call.1} parent=1 // pred_fallthru
      _
    // Predicated region
    $region10: #{tpu_custom_call.1} parent=1 // pred_check
      _
    $region11: #{tpu_custom_call.1} parent=1 // pred_check_branch
      %35 = sbr.rel (0) target = $region13
    $region12: #{tpu_custom_call.1} parent=1 // pred_region
      %36 = dma.done [#allocation4], 256
    $region13: #{tpu_custom_call.1} parent=1 // pred_fallthru
      _
    // Predicated region
    $region14: #{tpu_custom_call.1} parent=1 // pred_check
      _
    $region15: #{tpu_custom_call.1} parent=1 // pred_check_branch
      %38 = sbr.rel (0) target = $region17
    $region16: #{tpu_custom_call.1} parent=1 // pred_region
      %39 = dma.done [#allocation7], 256
    $region17: #{tpu_custom_call.1} parent=1 // pred_fallthru
      _
    %p40 = scmp.eq.s32.totalorder 0, 0
    // Predicated region
    $region18: #{tpu_custom_call.1} parent=1 // pred_check
      %p41 = pneg %p40
    $region19: #{tpu_custom_call.1} parent=1 // pred_check_branch
      %43 = sbr.rel (%p41) target = $region21
    $region20: #{tpu_custom_call.1} parent=1 // pred_region
      %44 = vst [vmem:[#allocation2] sm:$0xff] 0.0
    $region21: #{tpu_custom_call.1} parent=1 // pred_fallthru
      _
    %v45 = vld [vmem:[#allocation3] sm:$0xff]
    %v46 = vld [vmem:[#allocation3 + $0x8] sm:$0xff]
    %v47 = vld [vmem:[#allocation6] sm:$0xff]
    %v48 = vld [vmem:[#allocation6 + $0x8] sm:$0xff]
    %v49 = vsub.f32 %v45, %v47
    %v50 = vsub.f32 %v46, %v48
    %v51 = vmul.f32 %v49, %v49
    %v52 = vmul.f32 %v50, %v50
    %v53 = vadd.f32 %v51, 1e-06
    %v54 = vadd.f32 %v52, 1e-06
    %v55 = vrsqrt.pop %v53
    %v56 = vmul.f32 %v53, %v55
    %vm57 = vcmp.eq.f32.partialorder %v53, inf
    %v58 = vsel %vm57, %v53, %v56
    %vm59 = vcmp.eq.f32.partialorder %v53, 0.0
    %v60 = vand.u32 %v53, 2147483648
    %v61 = vsel %vm59, %v60, %v58
    %v62 = vrsqrt.pop %v54
    %v63 = vmul.f32 %v54, %v62
    %vm64 = vcmp.eq.f32.partialorder %v54, inf
    %v65 = vsel %vm64, %v54, %v63
    %vm66 = vcmp.eq.f32.partialorder %v54, 0.0
    %v67 = vand.u32 %v54, 2147483648
    %v68 = vsel %vm66, %v67, %v65
    %v69 = vld [vmem:[#allocation2] sm:$0xff]
    %v70 = vadd.f32 %v61, %v68
    %v71 = vadd.f32 %v69, %v70
    %72 = vst [vmem:[#allocation2] sm:$0xff] %v71
    // Predicated region
    $region22: #{tpu_custom_call.1} parent=1 // pred_check
      %p73 = pneg %p40
    $region23: #{tpu_custom_call.1} parent=1 // pred_check_branch
      %75 = sbr.rel (%p73) target = $region25
    $region24: #{tpu_custom_call.1} parent=1 // pred_region
      %v76 = vld [vmem:[#allocation2] sm:$0xff]
      %77 = vadd.xlane.f32.xlu0 %v76
      %v78 = vpop.xlane.xlu0 %77
      %v79 = vrot.slane %v78, 4
      %v80 = vadd.f32 %v78, %v79
      %v81 = vrot.slane %v80, 2
      %v82 = vadd.f32 %v80, %v81
      %v83 = vrot.slane %v82, 1
      %v84 = vadd.f32 %v82, %v83
      %s85 = vtos %v84
      %v86 = vrcp.pop 2048.0
      %s87 = vtos %v86
      %s88 = smul.f32 %s85, %s87
      %s89 = scalar_lea.smem [#allocation8], 0
      %90 = sst [smem:[%s89]] %s88
    $region25: #{tpu_custom_call.1} parent=1 // pred_fallthru
      _
    // Predicated region
    $region26: #{tpu_custom_call.1} parent=1 // pred_check
      _
    $region27: #{tpu_custom_call.1} parent=1 // pred_check_branch
      %92 = sbr.rel (0) target = $region29
    $region28: #{tpu_custom_call.1} parent=1 // pred_region
      %s94 = ssub.s32 16, 16
      %95 = vsyncadd [#allocation5], %s94
      %98 = dma.smem_to_hbm [#allocation8], 16, %s2, [#allocation5]
    $region29: #{tpu_custom_call.1} parent=1 // pred_fallthru
      _
    // Predicated region
    $region30: #{tpu_custom_call.1} parent=1 // pred_check
      _
    $region31: #{tpu_custom_call.1} parent=1 // pred_check_branch
      %100 = sbr.rel (0) target = $region33
    $region32: #{tpu_custom_call.1} parent=1 // pred_region
      %101 = dma.done [#allocation5], 16
    $region33: #{tpu_custom_call.1} parent=1 // pred_fallthru
      _
    %102 = sfence
    %103 = vsyncpa [#allocation4], 1
    %104 = vsyncpa [#allocation7], 1
    %105 = vsyncpa [#allocation5], 1

</llo_original>
